<compile_context>
chip_gen: v5e
topology: v5e:2x2
jax: 0.10.0
libtpu: 0.0.40
codegen_flags: <defaults>
</compile_context>

<pallas_src>
import jax
import jax.numpy as jnp
from jax.experimental import pallas as pl
from jax.experimental.pallas import tpu as pltpu


def _round_up(x: int, m: int) -> int:
    return ((x + m - 1) // m) * m


def _lwc_kernel(x_ref, w_ref, gate_ref, shift_ref, o_ref, acc_ref):
    """Grid = (B, S-tile, N-tile, K-tile); K innermost ("arbitrary").

    Accumulates X_ik @ W_kj into an f32 VMEM accumulator; at the last K step
    applies the per-batch gated epilogue:  out = acc * gate + shift.
    """
    k = pl.program_id(3)

    @pl.when(k == 0)
    def _():
        acc_ref[...] = jnp.zeros_like(acc_ref)

    acc_ref[...] += jnp.dot(x_ref[...], w_ref[...],
                            preferred_element_type=jnp.float32)

    @pl.when(k == pl.num_programs(3) - 1)
    def _():
        # (ts, tn) * (1, tn) + (1, tn)  -- broadcast over rows, f32 math.
        o_ref[...] = (acc_ref[...] * gate_ref[...]
                      + shift_ref[...]).astype(o_ref.dtype)


def linear_with_context(x, ctx, w, b, wb, wg, bg, *,
                        ts=512, tn=1024, tk=512, compute_dtype=None):
    """x: (B, S, in_dim), ctx: (B, ctx_dim).
    w: (in_dim, out_dim), b: (out_dim,), wb/wg: (ctx_dim, out_dim), bg: (out_dim,).

    compute_dtype: dtype the X/W tiles are streamed in (e.g. jnp.bfloat16 on
    bf16-native MXUs).  Accumulation / epilogue always happen in f32.
    Note: on v5e with f32 streams you may prefer tn=512 to keep the
    double-buffered footprint well below the 16 MiB scoped-VMEM default.
    """
    B, S, in_dim = x.shape
    out_dim = w.shape[1]
    out_dtype = x.dtype
    compute_dtype = jnp.dtype(compute_dtype) if compute_dtype is not None else x.dtype

    # --- hoisted context path (two tiny GEMMs; XLA handles them fine) --------
    gate = jax.nn.sigmoid(ctx @ wg + bg).astype(jnp.float32)    # (B, out)
    cbias = (ctx @ wb).astype(jnp.float32)                       # (B, out)
    shift = gate * b.astype(jnp.float32) + cbias                 # fold layer bias

    # --- tiny-shape fast path: padding + pallas_call overhead would dominate -
    if out_dim < 128 or in_dim < 64 or B * S < 64:
        y = jnp.einsum('bsk,kn->bsn',
                       x.astype(jnp.float32), w.astype(jnp.float32))
        return (gate[:, None, :] * y + shift[:, None, :]).astype(out_dtype)

    # --- aligned, adaptive tile sizes ----------------------------------------
    ts = min(ts, _round_up(S, 8))
    tn = min(tn, _round_up(out_dim, 128))   # out_dim <= 1024 => no N grid axis
    tk = min(tk, _round_up(in_dim, 128))

    # Zero-pad K only (OOB garbage along K would corrupt the accumulation).
    # M/N edge blocks are clipped by Pallas: garbage only reaches output
    # rows/columns that are never written back.
    Kp = _round_up(in_dim, tk)
    if Kp != in_dim:
        x_s = jnp.pad(x, ((0, 0), (0, 0), (0, Kp - in_dim)))
        w_s = jnp.pad(w, ((0, Kp - in_dim), (0, 0)))
    else:
        x_s, w_s = x, w
    x_s = x_s.astype(compute_dtype)
    w_s = w_s.astype(compute_dtype)

    gate3 = gate.reshape(B, 1, out_dim)     # per-batch rows, broadcast in-kernel
    shift3 = shift.reshape(B, 1, out_dim)

    grid = (B, pl.cdiv(S, ts), pl.cdiv(out_dim, tn), Kp // tk)
    n_s_tiles, n_n_tiles = grid[1], grid[2]

    isz = jnp.dtype(compute_dtype).itemsize
    flops = 2 * B * S * Kp * out_dim
    bytes_accessed = (
        B * S * Kp * isz * n_n_tiles                      # X, re-read per N tile
        + Kp * out_dim * isz * B * n_s_tiles              # W, re-read per (b, S-tile)
        + 2 * B * out_dim * 4 * n_s_tiles * n_n_tiles     # gate + shift rows
        + B * S * out_dim * jnp.dtype(out_dtype).itemsize  # output
    )

    out = pl.pallas_call(
        _lwc_kernel,
        out_shape=jax.ShapeDtypeStruct((B, S, out_dim), out_dtype),
        grid_spec=pltpu.PrefetchScalarGridSpec(
            num_scalar_prefetch=0,
            grid=grid,
            in_specs=[
                pl.BlockSpec((None, ts, tk), lambda b, i, j, k: (b, i, k)),  # X
                pl.BlockSpec((tk, tn), lambda b, i, j, k: (k, j)),           # W
                pl.BlockSpec((None, 1, tn), lambda b, i, j, k: (b, 0, j)),   # gate row
                pl.BlockSpec((None, 1, tn), lambda b, i, j, k: (b, 0, j)),   # shift row
            ],
            out_specs=pl.BlockSpec((None, ts, tn), lambda b, i, j, k: (b, i, j)),
            scratch_shapes=[pltpu.VMEM((ts, tn), jnp.float32)],
        ),
        compiler_params=pltpu.CompilerParams(
            dimension_semantics=("parallel", "parallel", "parallel", "arbitrary")),
        cost_estimate=pl.CostEstimate(
            flops=flops, transcendentals=0, bytes_accessed=bytes_accessed),
    )(x_s, w_s, gate3, shift3)

    return out


def _reference(x, ctx, w, b, wb, wg, bg):
    gate = jax.nn.sigmoid(ctx @ wg + bg)[:, None, :]
    bias = (ctx @ wb)[:, None, :]
    return gate * (x @ w + b) + bias


if __name__ == "__main__":
    # Small shapes consistent with the module's forward; aligned so the Pallas
    # path (not the tiny-shape XLA fallback) is exercised.
    B, S, in_dim, out_dim, ctx_dim = 2, 128, 128, 256, 32

    key = jax.random.PRNGKey(0)
    kx, kc, kw, kb, kwb, kwg, kbg = jax.random.split(key, 7)

    x = jax.random.normal(kx, (B, S, in_dim), dtype=jnp.float32)
    ctx = jax.random.normal(kc, (B, ctx_dim), dtype=jnp.float32)

    # Deterministic fan_in-scaled uniform init (like nn.Linear's default).
    def init_w(k, fan_in, fan_out):
        lim = 1.0 / (fan_in ** 0.5)
        return jax.random.uniform(k, (fan_in, fan_out), jnp.float32, -lim, lim)

    w = init_w(kw, in_dim, out_dim)                                  # layer.weight^T
    b = jax.random.uniform(kb, (out_dim,), jnp.float32,
                           -1.0 / in_dim ** 0.5, 1.0 / in_dim ** 0.5)
    wb = init_w(kwb, ctx_dim, out_dim)                               # bias_layer.weight^T
    wg = init_w(kwg, ctx_dim, out_dim)                               # gate_layer.weight^T
    bg = jax.random.uniform(kbg, (out_dim,), jnp.float32,
                            -1.0 / ctx_dim ** 0.5, 1.0 / ctx_dim ** 0.5)

    ref = _reference(x, ctx, w, b, wb, wg, bg)

    # f32 streaming path — strict numerics.
    out = jax.block_until_ready(linear_with_context(x, ctx, w, b, wb, wg, bg))
    assert out.shape == (B, S, out_dim)
    assert jnp.allclose(out, ref, atol=1e-4, rtol=1e-4)

    # bf16 streaming path (recommended on bf16-native MXUs) — loose tolerance.
    out_bf16 = jax.block_until_ready(
        linear_with_context(x, ctx, w, b, wb, wg, bg, compute_dtype=jnp.bfloat16))
    assert jnp.allclose(out_bf16.astype(jnp.float32), ref, atol=0.1, rtol=0.05)

    print("KERNEL_OK")
</pallas_src>

<mosaic_0001>
module attributes {stable_mosaic.version = 11 : i64} {
  func.func @_lwc_kernel(%arg0: i32, %arg1: i32, %arg2: i32, %arg3: i32, %arg4: memref<1x128x128xf32, #tpu.memory_space<vmem>>, %arg5: memref<128x256xf32, #tpu.memory_space<vmem>>, %arg6: memref<1x1x256xf32, #tpu.memory_space<vmem>>, %arg7: memref<1x1x256xf32, #tpu.memory_space<vmem>>, %arg8: memref<1x128x256xf32, #tpu.memory_space<vmem>>, %arg9: memref<128x256xf32, #tpu.memory_space<vmem>>) attributes {dimension_semantics = [#tpu.dimension_semantics<parallel>, #tpu.dimension_semantics<parallel>, #tpu.dimension_semantics<parallel>, #tpu.dimension_semantics<arbitrary>], iteration_bounds = array<i64: 2, 1, 1, 1>, scalar_prefetch = 0 : i64, scratch_operands = 1 : i64, tpu.core_type = #tpu.core_type<tc>, window_params = [{transform_indices = @transform_0, window_bounds = array<i64: 1, 128, 128>}, {transform_indices = @transform_1, window_bounds = array<i64: 128, 256>}, {transform_indices = @transform_2, window_bounds = array<i64: 1, 1, 256>}, {transform_indices = @transform_3, window_bounds = array<i64: 1, 1, 256>}, {transform_indices = @transform_4, window_bounds = array<i64: 1, 128, 256>}]} {
    %c0_i32 = arith.constant 0 : i32
    %0 = arith.cmpi eq, %arg3, %c0_i32 : i32
    %1 = arith.extui %0 : i1 to i32
    %c0_i32_0 = arith.constant 0 : i32
    %2 = arith.cmpi ne, %1, %c0_i32_0 : i32
    scf.if %2 {
      %cst_11 = arith.constant 0.000000e+00 : f32
      %13 = vector.broadcast %cst_11 : f32 to vector<128x256xf32>
      %c0_12 = arith.constant 0 : index
      %c0_13 = arith.constant 0 : index
      %14 = vector.load %arg9[%c0_12, %c0_13] : memref<128x256xf32, #tpu.memory_space<vmem>>, vector<128x256xf32>
      tpu.vector_store %arg9[%c0_12, %c0_13], %13 {strides = array<i32>} : memref<128x256xf32, #tpu.memory_space<vmem>>, vector<128x256xf32>,
    } else {
    }
    %c0 = arith.constant 0 : index
    %c0_1 = arith.constant 0 : index
    %3 = vector.load %arg9[%c0, %c0_1] : memref<128x256xf32, #tpu.memory_space<vmem>>, vector<128x256xf32>
    %c0_2 = arith.constant 0 : index
    %c0_3 = arith.constant 0 : index
    %c0_4 = arith.constant 0 : index
    %4 = vector.load %arg4[%c0_2, %c0_3, %c0_4] : memref<1x128x128xf32, #tpu.memory_space<vmem>>, vector<1x128x128xf32>
    %5 = vector.shape_cast %4 : vector<1x128x128xf32> to vector<128x128xf32>
    %c0_5 = arith.constant 0 : index
    %c0_6 = arith.constant 0 : index
    %6 = vector.load %arg5[%c0_5, %c0_6] : memref<128x256xf32, #tpu.memory_space<vmem>>, vector<128x256xf32>
    %cst = arith.constant dense<0.000000e+00> : vector<128x256xf32>
    %7 = tpu.matmul %5, %6, %cst {dimension_numbers = #tpu.dot_dimension_numbers<[1], [0], [0], [1], [0, 0, 1, 1], [], []>} : vector<128x128xf32>, vector<128x256xf32>, vector<128x256xf32> -> vector<128x256xf32>
    %8 = arith.addf %3, %7 : vector<128x256xf32>
    %c0_7 = arith.constant 0 : index
    %c0_8 = arith.constant 0 : index
    %9 = vector.load %arg9[%c0_7, %c0_8] : memref<128x256xf32, #tpu.memory_space<vmem>>, vector<128x256xf32>
    tpu.vector_store %arg9[%c0_7, %c0_8], %8 {strides = array<i32>} : memref<128x256xf32, #tpu.memory_space<vmem>>, vector<128x256xf32>,
    %c0_i32_9 = arith.constant 0 : i32
    %10 = arith.cmpi eq, %arg3, %c0_i32_9 : i32
    %11 = arith.extui %10 : i1 to i32
    %c0_i32_10 = arith.constant 0 : i32
    %12 = arith.cmpi ne, %11, %c0_i32_10 : i32
    scf.if %12 {
      %c0_11 = arith.constant 0 : index
      %c0_12 = arith.constant 0 : index
      %13 = vector.load %arg9[%c0_11, %c0_12] : memref<128x256xf32, #tpu.memory_space<vmem>>, vector<128x256xf32>
      %c0_13 = arith.constant 0 : index
      %c0_14 = arith.constant 0 : index
      %c0_15 = arith.constant 0 : index
      %14 = vector.load %arg6[%c0_13, %c0_14, %c0_15] : memref<1x1x256xf32, #tpu.memory_space<vmem>>, vector<1x1x256xf32>
      %15 = vector.shape_cast %14 : vector<1x1x256xf32> to vector<1x256xf32>
      %16 = vector.broadcast %15 : vector<1x256xf32> to vector<128x256xf32>
      %17 = arith.mulf %13, %16 : vector<128x256xf32>
      %c0_16 = arith.constant 0 : index
      %c0_17 = arith.constant 0 : index
      %c0_18 = arith.constant 0 : index
      %18 = vector.load %arg7[%c0_16, %c0_17, %c0_18] : memref<1x1x256xf32, #tpu.memory_space<vmem>>, vector<1x1x256xf32>
      %19 = vector.shape_cast %18 : vector<1x1x256xf32> to vector<1x256xf32>
      %20 = vector.broadcast %19 : vector<1x256xf32> to vector<128x256xf32>
      %21 = arith.addf %17, %20 : vector<128x256xf32>
      %c0_19 = arith.constant 0 : index
      %c0_20 = arith.constant 0 : index
      %c0_21 = arith.constant 0 : index
      %22 = vector.load %arg8[%c0_19, %c0_20, %c0_21] : memref<1x128x256xf32, #tpu.memory_space<vmem>>, vector<1x128x256xf32>
      %23 = vector.shape_cast %22 : vector<1x128x256xf32> to vector<128x256xf32>
      %24 = vector.shape_cast %21 : vector<128x256xf32> to vector<1x128x256xf32>
      tpu.vector_store %arg8[%c0_19, %c0_20, %c0_21], %24 {strides = array<i32>} : memref<1x128x256xf32, #tpu.memory_space<vmem>>, vector<1x128x256xf32>,
    } else {
    }
    return
  }
  func.func @transform_0(%arg0: i32, %arg1: i32, %arg2: i32, %arg3: i32) -> (i32, i32, i32) {
    %c0_i32 = arith.constant 0 : i32
    return %arg0, %arg1, %arg3 : i32, i32, i32
  }
  func.func @transform_1(%arg0: i32, %arg1: i32, %arg2: i32, %arg3: i32) -> (i32, i32) {
    %c0_i32 = arith.constant 0 : i32
    return %arg3, %arg2 : i32, i32
  }
  func.func @transform_2(%arg0: i32, %arg1: i32, %arg2: i32, %arg3: i32) -> (i32, i32, i32) {
    %c0_i32 = arith.constant 0 : i32
    %c0_i32_0 = arith.constant 0 : i32
    return %arg0, %c0_i32, %arg2 : i32, i32, i32
  }
  func.func @transform_3(%arg0: i32, %arg1: i32, %arg2: i32, %arg3: i32) -> (i32, i32, i32) {
    %c0_i32 = arith.constant 0 : i32
    %c0_i32_0 = arith.constant 0 : i32
    return %arg0, %c0_i32, %arg2 : i32, i32, i32
  }
  func.func @transform_4(%arg0: i32, %arg1: i32, %arg2: i32, %arg3: i32) -> (i32, i32, i32) {
    %c0_i32 = arith.constant 0 : i32
    return %arg0, %arg1, %arg2 : i32, i32, i32
  }
}

</mosaic_0001>

<llo_original>
// kernel: tpu_custom_call.1
$region0: #{tpu_custom_call.1}
  #allocation0 [shape = 'u32[]', space=smem, size = 0x4, offset = 0x4, fixed_abs, tag = 'smem constant byte address 0x4 - core index']
  #allocation1 [shape = 'u32[72,128]{1,0:T(1,128)}', space=vmem, size = 0x9000, scoped, tag = 'internal scratch']
  #allocation2 [shape = 'f32[128,256]{1,0:T(8,128)}', space=vmem, size = 0x20000, scoped, tag = 'scratch operand']
  %s0 = inlined_call_operand.hbm [shape: f32[2,128,128], index: 0, kind: input, shape index: {}]
  %s1 = inlined_call_operand.hbm [shape: f32[128,256], index: 1, kind: input, shape index: {}]
  %s2 = inlined_call_operand.hbm [shape: f32[2,1,256], index: 2, kind: input, shape index: {}]
  %s3 = inlined_call_operand.hbm [shape: f32[2,1,256], index: 3, kind: input, shape index: {}]
  %s4 = inlined_call_operand.hbm [shape: f32[2,128,256], index: 4, kind: output, shape index: {}]
  %s5 = sld [smem:[#allocation0]]
  $region73: #{tpu_custom_call.1} parent=0
    _
  %s7 = ssub.s32 1, %s5
  %s8 = scalar_select 0, %s7, %s5
  $region1: #{tpu_custom_call.1} parent=0
    #allocation3 [shape = 'u8[131072]{0}', space=vmem, size = 0x20000, scoped, tag = 'input window, operand 0']
    #allocation4 [shape = 's32[2]{0}', space=sflag, size = 0x8, scoped, tag = 'scoped memory for tpu_custom_call.1']
    #allocation5 [shape = 's32[2]{0}', space=sflag, size = 0x8, scoped, tag = 'scoped memory for tpu_custom_call.1']
    #allocation6 [shape = 'u8[131072]{0}', space=vmem, size = 0x20000, scoped, tag = 'input window, operand 1, single buffered']
    #allocation7 [shape = 's32[1]{0}', space=sflag, size = 0x4, scoped, tag = 'scoped memory for tpu_custom_call.1']
    #allocation8 [shape = 'u8[2048]{0}', space=vmem, size = 0x800, scoped, tag = 'input window, operand 2']
    #allocation9 [shape = 'u8[2048]{0}', space=vmem, size = 0x800, scoped, tag = 'input window, operand 3']
    #allocation10 [shape = 'u8[262144]{0}', space=vmem, size = 0x40000, scoped, tag = 'output window, operand 0']
    %9 = vsyncpa [#allocation4], 0
    %s10 = scalar_lea.sflag [#allocation4], 1
    %11 = vsyncpa %s10, 0
    %12 = vsyncpa [#allocation7], 0
    %13 = vsyncpa [#allocation5], 0
    %s14 = scalar_lea.sflag [#allocation5], 1
    %15 = vsyncpa %s14, 0
    loop: start=0, step=1, limit=4
    $region2: #{tpu_custom_call.1} parent=1 // loop_pre_header
      _
    $region3: #{tpu_custom_call.1} parent=1 // loop_header
      %s17 = sphi 0, %s21
      %p18 = scmp.ge.s32.totalorder %s17, 4
      %s24 = sphi 0, %s50
      %s25 = sphi 0, %s46
      %s26 = sphi 0, %s42
      %s27 = sphi 0, %s38
      %s28 = sphi 0, %s24
      %s29 = sphi 0, %s25
      %s30 = sphi 0, %s26
      %s31 = sphi 0, %s27
      %s32 = sphi 0, %s28
      %s33 = sphi 0, %s29
      %s34 = sphi 0, %s30
      %s35 = sphi 0, %s31
      %s57 = sphi 0, %s59
      %s60 = sphi 0, %s57
      %s61 = sphi 0, %s60
      %s77 = sphi 0, %s61
      %s85 = sphi 0, %s87
      %s88 = sphi 0, %s85
      %s89 = sphi 0, %s88
      %s105 = sphi 0, %s89
      %s113 = sphi 0, %s115
      %s116 = sphi 0, %s113
      %s117 = sphi 0, %s116
      %s133 = sphi 0, %s117
      %s141 = sphi 0, %s143
      %s144 = sphi 0, %s141
      %s145 = sphi 0, %s144
      %s161 = sphi 0, %s145
      %s171 = sphi 0, %s173
      %s174 = sphi 0, %s171
      %s175 = sphi 0, %s174
      %s191 = sphi 0, %s175
    $region4: #{tpu_custom_call.1} parent=1 // loop_header_branch
      %20 = sbr.rel (%p18) target = $region8
    $region5: #{tpu_custom_call.1} parent=1 // loop_body
      %s22 = ssub.s32 %s17, 1
      %s23 = ssub.s32 %s17, 2
      %s36 = sadd.s32 1, %s27
      %p37 = scmp.ge.s32.totalorder %s36, 1
      %s38 = scalar_select %p37, 0, %s36
      %s39 = sadd.s32 1, %s26
      %s40 = scalar_select %p37, %s39, %s26
      %p41 = scmp.ge.s32.totalorder %s40, 1
      %s42 = scalar_select %p41, 0, %s40
      %s43 = sadd.s32 1, %s25
      %s44 = scalar_select %p41, %s43, %s25
      %p45 = scmp.ge.s32.totalorder %s44, 1
      %s46 = scalar_select %p45, 0, %s44
      %s47 = sadd.s32 1, %s24
      %s48 = scalar_select %p45, %s47, %s24
      %p49 = scmp.ge.s32.totalorder %s48, 2
      %s50 = scalar_select %p49, 0, %s48
      %s51 = ssub.s32 %s24, %s50
      %s52 = ssub.s32 %s25, %s46
      %s53 = sor.u32 %s51, %s52
      %s54 = ssub.s32 %s27, %s38
      %s55 = sor.u32 %s53, %s54
      %p56 = scmp.eq.s32.totalorder %s55, 0
      %s58 = sadd.s32 %s57, 1
      %s59 = scalar_select %p56, %s57, %s58
      %p62 = pneg %p56
      %p63 = scmp.eq.s32.totalorder %s17, 1
      %p64 = por %p62, %p63
      %p65 = scmp.ne.s32.totalorder %s57, %s60
      %p66 = scmp.eq.s32.totalorder %s17, 0
      %p67 = por %p65, %p66
      %p68 = scmp.ne.s32.totalorder %s57, %s60
      %p69 = scmp.eq.s32.totalorder %s22, 1
      %p70 = por %p68, %p69
      %p71 = scmp.ne.s32.totalorder %s60, %s61
      %p72 = scmp.eq.s32.totalorder %s22, 0
      %p73 = por %p71, %p72
      %p74 = scmp.ne.s32.totalorder %s60, %s61
      %p75 = scmp.eq.s32.totalorder %s23, 1
      %p76 = por %p74, %p75
      %p78 = scmp.ne.s32.totalorder %s61, %s77
      %p79 = scmp.eq.s32.totalorder %s23, 0
      %p80 = por %p78, %p79
      %s81 = ssub.s32 %s27, %s38
      %s82 = ssub.s32 %s26, %s42
      %s83 = sor.u32 %s81, %s82
      %p84 = scmp.eq.s32.totalorder %s83, 0
      %s86 = sadd.s32 %s85, 1
      %s87 = scalar_select %p84, %s85, %s86
      %p90 = pneg %p84
      %p91 = scmp.eq.s32.totalorder %s17, 1
      %p92 = por %p90, %p91
      %p93 = scmp.ne.s32.totalorder %s85, %s88
      %p94 = scmp.eq.s32.totalorder %s17, 0
      %p95 = por %p93, %p94
      %p96 = scmp.ne.s32.totalorder %s85, %s88
      %p97 = scmp.eq.s32.totalorder %s22, 1
      %p98 = por %p96, %p97
      %p99 = scmp.ne.s32.totalorder %s88, %s89
      %p100 = scmp.eq.s32.totalorder %s22, 0
      %p101 = por %p99, %p100
      %p102 = scmp.ne.s32.totalorder %s88, %s89
      %p103 = scmp.eq.s32.totalorder %s23, 1
      %p104 = por %p102, %p103
      %p106 = scmp.ne.s32.totalorder %s89, %s105
      %p107 = scmp.eq.s32.totalorder %s23, 0
      %p108 = por %p106, %p107
      %s109 = ssub.s32 %s24, %s50
      %s110 = ssub.s32 %s26, %s42
      %s111 = sor.u32 %s109, %s110
      %p112 = scmp.eq.s32.totalorder %s111, 0
      %s114 = sadd.s32 %s113, 1
      %s115 = scalar_select %p112, %s113, %s114
      %p118 = pneg %p112
      %p119 = scmp.eq.s32.totalorder %s17, 1
      %p120 = por %p118, %p119
      %p121 = scmp.ne.s32.totalorder %s113, %s116
      %p122 = scmp.eq.s32.totalorder %s17, 0
      %p123 = por %p121, %p122
      %p124 = scmp.ne.s32.totalorder %s113, %s116
      %p125 = scmp.eq.s32.totalorder %s22, 1
      %p126 = por %p124, %p125
      %p127 = scmp.ne.s32.totalorder %s116, %s117
      %p128 = scmp.eq.s32.totalorder %s22, 0
      %p129 = por %p127, %p128
      %p130 = scmp.ne.s32.totalorder %s116, %s117
      %p131 = scmp.eq.s32.totalorder %s23, 1
      %p132 = por %p130, %p131
      %p134 = scmp.ne.s32.totalorder %s117, %s133
      %p135 = scmp.eq.s32.totalorder %s23, 0
      %p136 = por %p134, %p135
      %s137 = ssub.s32 %s24, %s50
      %s138 = ssub.s32 %s26, %s42
      %s139 = sor.u32 %s137, %s138
      %p140 = scmp.eq.s32.totalorder %s139, 0
      %s142 = sadd.s32 %s141, 1
      %s143 = scalar_select %p140, %s141, %s142
      %p146 = pneg %p140
      %p147 = scmp.eq.s32.totalorder %s17, 1
      %p148 = por %p146, %p147
      %p149 = scmp.ne.s32.totalorder %s141, %s144
      %p150 = scmp.eq.s32.totalorder %s17, 0
      %p151 = por %p149, %p150
      %p152 = scmp.ne.s32.totalorder %s141, %s144
      %p153 = scmp.eq.s32.totalorder %s22, 1
      %p154 = por %p152, %p153
      %p155 = scmp.ne.s32.totalorder %s144, %s145
      %p156 = scmp.eq.s32.totalorder %s22, 0
      %p157 = por %p155, %p156
      %p158 = scmp.ne.s32.totalorder %s144, %s145
      %p159 = scmp.eq.s32.totalorder %s23, 1
      %p160 = por %p158, %p159
      %p162 = scmp.ne.s32.totalorder %s145, %s161
      %p163 = scmp.eq.s32.totalorder %s23, 0
      %p164 = por %p162, %p163
      %s165 = ssub.s32 %s24, %s50
      %s166 = ssub.s32 %s25, %s46
      %s167 = sor.u32 %s165, %s166
      %s168 = ssub.s32 %s26, %s42
      %s169 = sor.u32 %s167, %s168
      %p170 = scmp.eq.s32.totalorder %s169, 0
      %s172 = sadd.s32 %s171, 1
      %s173 = scalar_select %p170, %s171, %s172
      %p176 = pneg %p170
      %p177 = scmp.eq.s32.totalorder %s17, 1
      %p178 = por %p176, %p177
      %p179 = scmp.ne.s32.totalorder %s171, %s174
      %p180 = scmp.eq.s32.totalorder %s17, 0
      %p181 = por %p179, %p180
      %p182 = scmp.ne.s32.totalorder %s171, %s174
      %p183 = scmp.eq.s32.totalorder %s22, 1
      %p184 = por %p182, %p183
      %p185 = scmp.ne.s32.totalorder %s174, %s175
      %p186 = scmp.eq.s32.totalorder %s22, 0
      %p187 = por %p185, %p186
      %p188 = scmp.ne.s32.totalorder %s174, %s175
      %p189 = scmp.eq.s32.totalorder %s23, 1
      %p190 = por %p188, %p189
      %p192 = scmp.ne.s32.totalorder %s175, %s191
      %p193 = scmp.eq.s32.totalorder %s23, 0
      %p194 = por %p192, %p193
      %p195 = scmp.le.s32.totalorder 1, %s17
      %p196 = scmp.lt.s32.totalorder %s17, 3
      %p197 = pnand %p195, %p196
      %p198 = pneg %p197
      // Predicated region
      $region9: #{tpu_custom_call.1} parent=5 // pred_check
        _
      $region10: #{tpu_custom_call.1} parent=5 // pred_check_branch
        %200 = sbr.rel (%p197) target = $region12
      $region11: #{tpu_custom_call.1} parent=5 // pred_region
        %s201 = ssub.s32 %s17, 1
        // Predicated region
        $region13: #{tpu_custom_call.1} parent=11 // pred_check
          %p202 = pneg %p101
        $region14: #{tpu_custom_call.1} parent=11 // pred_check_branch
          %204 = sbr.rel (%p202) target = $region16
        $region15: #{tpu_custom_call.1} parent=11 // pred_region
          %s205 = smul.u32 16, %s31
          %s206 = smul.u32 2, %s30
          %208 = vsyncadd [#allocation7], 0
          %s209 = smul.addr %s205, 2
          %s210 = sadd.s32 %s206, %s209
          %s211 = smul.addr %s210, 8
          %s212 = scalar_lea.hbm %s1, %s211
          %s213 = sshll.u32 %s212, 4
          %s214 = int_to_ptr.hbm [resolvable:$true] %s213
          %s215 = sshll.u32 [#allocation6], 4
          %s216 = int_to_ptr.vmem [resolvable:$true] %s215
          %221 = dma.hbm_to_vmem [thread:$0]  %s214, 4096, %s216, [#allocation7], 256, 256, 16
        $region16: #{tpu_custom_call.1} parent=11 // pred_fallthru
          _
      $region12: #{tpu_custom_call.1} parent=5 // pred_fallthru
        _
      %p222 = scmp.lt.s32.totalorder %s17, 2
      // Predicated region
      $region17: #{tpu_custom_call.1} parent=5 // pred_check
        %p223 = pneg %p222
      $region18: #{tpu_custom_call.1} parent=5 // pred_check_branch
        %225 = sbr.rel (%p223) target = $region20
      $region19: #{tpu_custom_call.1} parent=5 // pred_region
        // Predicated region
        $region21: #{tpu_custom_call.1} parent=19 // pred_check
          %p226 = pneg %p67
        $region22: #{tpu_custom_call.1} parent=19 // pred_check_branch
          %228 = sbr.rel (%p226) target = $region24
        $region23: #{tpu_custom_call.1} parent=19 // pred_region
          %s229 = sand.u32 %s17, 1
          %s230 = scalar_lea.sflag [#allocation4], %s229
          %s231 = sand.u32 %s57, 1
          %s232 = smul.addr %s231, 128
          %s233 = scalar_lea.vmem [#allocation3], %s232
          %s234 = smul.u32 16, %s25
          %236 = vsyncadd %s230, 0
          %s237 = sadd.s32 %s27, %s234
          %s238 = smul.addr %s24, 16
          %s239 = sadd.s32 %s237, %s238
          %s240 = smul.addr %s239, 8
          %s241 = scalar_lea.hbm %s0, %s240
          %s242 = sshll.u32 %s241, 4
          %s243 = int_to_ptr.hbm [resolvable:$true] %s242
          %s244 = sshll.u32 %s233, 4
          %s245 = int_to_ptr.vmem [resolvable:$true] %s244
          %250 = dma.hbm_to_vmem [thread:$0]  %s243, 2048, %s245, %s230, 128, 128, 8
        $region24: #{tpu_custom_call.1} parent=19 // pred_fallthru
          _
        // Predicated region
        $region25: #{tpu_custom_call.1} parent=19 // pred_check
          %p251 = pneg %p123
        $region26: #{tpu_custom_call.1} parent=19 // pred_check_branch
          %253 = sbr.rel (%p251) target = $region28
        $region27: #{tpu_custom_call.1} parent=19 // pred_region
          %s254 = sand.u32 %s17, 1
          %s255 = scalar_lea.sflag [#allocation4], %s254
          %s256 = sand.u32 %s113, 1
          %s257 = smul.addr %s256, 2
          %s258 = scalar_lea.vmem [#allocation8], %s257
          %s259 = smul.u32 2, %s26
          %261 = vsyncadd %s255, 0
          %s262 = smul.addr %s24, 2
          %s263 = sadd.s32 %s259, %s262
          %s264 = scalar_lea.hbm %s2, %s263
          %s266 = sshll.u32 %s264, 4
          %s267 = int_to_ptr.hbm [resolvable:$true] %s266
          %s268 = sshll.u32 %s258, 4
          %s269 = int_to_ptr.vmem [resolvable:$true] %s268
          %271 = dma.hbm_to_vmem [thread:$0]  %s267, 32, %s269, %s255
        $region28: #{tpu_custom_call.1} parent=19 // pred_fallthru
          _
        // Predicated region
        $region29: #{tpu_custom_call.1} parent=19 // pred_check
          %p272 = pneg %p151
        $region30: #{tpu_custom_call.1} parent=19 // pred_check_branch
          %274 = sbr.rel (%p272) target = $region32
        $region31: #{tpu_custom_call.1} parent=19 // pred_region
          %s275 = sand.u32 %s17, 1
          %s276 = scalar_lea.sflag [#allocation4], %s275
          %s277 = sand.u32 %s141, 1
          %s278 = smul.addr %s277, 2
          %s279 = scalar_lea.vmem [#allocation9], %s278
          %s280 = smul.u32 2, %s26
          %282 = vsyncadd %s276, 0
          %s283 = smul.addr %s24, 2
          %s284 = sadd.s32 %s280, %s283
          %s285 = scalar_lea.hbm %s3, %s284
          %s287 = sshll.u32 %s285, 4
          %s288 = int_to_ptr.hbm [resolvable:$true] %s287
          %s289 = sshll.u32 %s279, 4
          %s290 = int_to_ptr.vmem [resolvable:$true] %s289
          %292 = dma.hbm_to_vmem [thread:$0]  %s288, 32, %s290, %s276
        $region32: #{tpu_custom_call.1} parent=19 // pred_fallthru
          _
      $region20: #{tpu_custom_call.1} parent=5 // pred_fallthru
        _
      %p293 = scmp.le.s32.totalorder 1, %s17
      %p294 = scmp.lt.s32.totalorder %s17, 3
      %p295 = pnand %p293, %p294
      %p296 = pneg %p295
      // Predicated region
      $region33: #{tpu_custom_call.1} parent=5 // pred_check
        _
      $region34: #{tpu_custom_call.1} parent=5 // pred_check_branch
        %298 = sbr.rel (%p295) target = $region36
      $region35: #{tpu_custom_call.1} parent=5 // pred_region
        %s299 = ssub.s32 %s17, 1
        %s300 = sand.u32 %s22, 1
        %s301 = scalar_lea.sflag [#allocation4], %s300
        %s302 = sand.u32 %s60, 1
        %s303 = smul.addr %s302, 128
        %s304 = scalar_lea.vmem [#allocation3], %s303
        // Predicated region
        $region37: #{tpu_custom_call.1} parent=35 // pred_check
          %p305 = pneg %p73
        $region38: #{tpu_custom_call.1} parent=35 // pred_check_branch
          %307 = sbr.rel (%p305) target = $region40
        $region39: #{tpu_custom_call.1} parent=35 // pred_region
          %309 = dma.done %s301, 2048
        $region40: #{tpu_custom_call.1} parent=35 // pred_fallthru
          _
        // Predicated region
        $region41: #{tpu_custom_call.1} parent=35 // pred_check
          %p310 = pneg %p101
        $region42: #{tpu_custom_call.1} parent=35 // pred_check_branch
          %312 = sbr.rel (%p310) target = $region44
        $region43: #{tpu_custom_call.1} parent=35 // pred_region
          %314 = dma.done [#allocation7], 4096
        $region44: #{tpu_custom_call.1} parent=35 // pred_fallthru
          _
        %s315 = sand.u32 %s22, 1
        %s316 = scalar_lea.sflag [#allocation4], %s315
        %s317 = sand.u32 %s116, 1
        %s318 = smul.addr %s317, 2
        %s319 = scalar_lea.vmem [#allocation8], %s318
        // Predicated region
        $region45: #{tpu_custom_call.1} parent=35 // pred_check
          %p320 = pneg %p129
        $region46: #{tpu_custom_call.1} parent=35 // pred_check_branch
          %322 = sbr.rel (%p320) target = $region48
        $region47: #{tpu_custom_call.1} parent=35 // pred_region
          %324 = dma.done %s316, 32
        $region48: #{tpu_custom_call.1} parent=35 // pred_fallthru
          _
        %s325 = sand.u32 %s22, 1
        %s326 = scalar_lea.sflag [#allocation4], %s325
        %s327 = sand.u32 %s144, 1
        %s328 = smul.addr %s327, 2
        %s329 = scalar_lea.vmem [#allocation9], %s328
        // Predicated region
        $region49: #{tpu_custom_call.1} parent=35 // pred_check
          %p330 = pneg %p157
        $region50: #{tpu_custom_call.1} parent=35 // pred_check_branch
          %332 = sbr.rel (%p330) target = $region52
        $region51: #{tpu_custom_call.1} parent=35 // pred_region
          %334 = dma.done %s326, 32
        $region52: #{tpu_custom_call.1} parent=35 // pred_fallthru
          _
        %s335 = sand.u32 %s22, 1
        %s336 = scalar_lea.sflag [#allocation4], %s335
        %s337 = sand.u32 %s60, 1
        %s338 = smul.addr %s337, 128
        %s339 = scalar_lea.vmem [#allocation3], %s338
        %p340 = pneg %p73
        %p341 = pneg %p70
        %p342 = pneg %p101
        %p343 = pneg %p98
        %s344 = sand.u32 %s22, 1
        %s345 = scalar_lea.sflag [#allocation4], %s344
        %s346 = sand.u32 %s116, 1
        %s347 = smul.addr %s346, 2
        %s348 = scalar_lea.vmem [#allocation8], %s347
        %p349 = pneg %p129
        %p350 = pneg %p126
        %s351 = sand.u32 %s22, 1
        %s352 = scalar_lea.sflag [#allocation4], %s351
        %s353 = sand.u32 %s144, 1
        %s354 = smul.addr %s353, 2
        %s355 = scalar_lea.vmem [#allocation9], %s354
        %p356 = pneg %p157
        %p357 = pneg %p154
        %p358 = pneg %p187
        %p359 = pneg %p184
        %s360 = sand.u32 %s174, 1
        %s361 = scalar_lea.sflag [#allocation5], %s360
        %s362 = sand.u32 %s174, 1
        %s363 = smul.addr %s362, 256
        %s364 = scalar_lea.vmem [#allocation10], %s363
        %s365 = smul.u32 16, %s29
        %s366 = smul.u32 16, %s31
        %s367 = smul.u32 2, %s30
        %s368 = smul.u32 2, %s30
        %s369 = smul.u32 2, %s30
        %s370 = smul.u32 16, %s29
        %s371 = smul.u32 2, %s30
        %p372 = scmp.eq.s32.totalorder %s31, 0
        // Predicated region
        $region53: #{tpu_custom_call.1} parent=35 // pred_check
          %p373 = pneg %p372
        $region54: #{tpu_custom_call.1} parent=35 // pred_check_branch
          %375 = sbr.rel (%p373) target = $region56
        $region55: #{tpu_custom_call.1} parent=35 // pred_region
          %376 = vst [vmem:[#allocation2] sm:$0xff] 0.0
          %377 = vst [vmem:[#allocation2 + $0x8] sm:$0xff] 0.0
          %378 = vst [vmem:[#allocation2 + $0x10] sm:$0xff] 0.0
          %379 = vst [vmem:[#allocation2 + $0x18] sm:$0xff] 0.0
          %380 = vst [vmem:[#allocation2 + $0x20] sm:$0xff] 0.0
          %381 = vst [vmem:[#allocation2 + $0x28] sm:$0xff] 0.0
          %382 = vst [vmem:[#allocation2 + $0x30] sm:$0xff] 0.0
          %383 = vst [vmem:[#allocation2 + $0x38] sm:$0xff] 0.0
          %384 = vst [vmem:[#allocation2 + $0x40] sm:$0xff] 0.0
          %385 = vst [vmem:[#allocation2 + $0x48] sm:$0xff] 0.0
          %386 = vst [vmem:[#allocation2 + $0x50] sm:$0xff] 0.0
          %387 = vst [vmem:[#allocation2 + $0x58] sm:$0xff] 0.0
          %388 = vst [vmem:[#allocation2 + $0x60] sm:$0xff] 0.0
          %389 = vst [vmem:[#allocation2 + $0x68] sm:$0xff] 0.0
          %390 = vst [vmem:[#allocation2 + $0x70] sm:$0xff] 0.0
          %391 = vst [vmem:[#allocation2 + $0x78] sm:$0xff] 0.0
          %392 = vst [vmem:[#allocation2 + $0x80] sm:$0xff] 0.0
          %393 = vst [vmem:[#allocation2 + $0x88] sm:$0xff] 0.0
          %394 = vst [vmem:[#allocation2 + $0x90] sm:$0xff] 0.0
          %395 = vst [vmem:[#allocation2 + $0x98] sm:$0xff] 0.0
          %396 = vst [vmem:[#allocation2 + $0xa0] sm:$0xff] 0.0
          %397 = vst [vmem:[#allocation2 + $0xa8] sm:$0xff] 0.0
          %398 = vst [vmem:[#allocation2 + $0xb0] sm:$0xff] 0.0
          %399 = vst [vmem:[#allocation2 + $0xb8] sm:$0xff] 0.0
          %400 = vst [vmem:[#allocation2 + $0xc0] sm:$0xff] 0.0
          %401 = vst [vmem:[#allocation2 + $0xc8] sm:$0xff] 0.0
          %402 = vst [vmem:[#allocation2 + $0xd0] sm:$0xff] 0.0
          %403 = vst [vmem:[#allocation2 + $0xd8] sm:$0xff] 0.0
          %404 = vst [vmem:[#allocation2 + $0xe0] sm:$0xff] 0.0
          %405 = vst [vmem:[#allocation2 + $0xe8] sm:$0xff] 0.0
          %406 = vst [vmem:[#allocation2 + $0xf0] sm:$0xff] 0.0
          %407 = vst [vmem:[#allocation2 + $0xf8] sm:$0xff] 0.0
        $region56: #{tpu_custom_call.1} parent=35 // pred_fallthru
          _
        %v408 = vld [vmem:[#allocation2] sm:$0xff]
        %v409 = vld [vmem:[#allocation2 + $0x8] sm:$0xff]
        %v410 = vld [vmem:[#allocation2 + $0x10] sm:$0xff]
        %v411 = vld [vmem:[#allocation2 + $0x18] sm:$0xff]
        %v412 = vld [vmem:[#allocation2 + $0x20] sm:$0xff]
        %v413 = vld [vmem:[#allocation2 + $0x28] sm:$0xff]
        %v414 = vld [vmem:[#allocation2 + $0x30] sm:$0xff]
        %v415 = vld [vmem:[#allocation2 + $0x38] sm:$0xff]
        %v416 = vld [vmem:[#allocation2 + $0x40] sm:$0xff]
        %v417 = vld [vmem:[#allocation2 + $0x48] sm:$0xff]
        %v418 = vld [vmem:[#allocation2 + $0x50] sm:$0xff]
        %v419 = vld [vmem:[#allocation2 + $0x58] sm:$0xff]
        %v420 = vld [vmem:[#allocation2 + $0x60] sm:$0xff]
        %v421 = vld [vmem:[#allocation2 + $0x68] sm:$0xff]
        %v422 = vld [vmem:[#allocation2 + $0x70] sm:$0xff]
        %v423 = vld [vmem:[#allocation2 + $0x78] sm:$0xff]
        %v424 = vld [vmem:[#allocation2 + $0x80] sm:$0xff]
        %v425 = vld [vmem:[#allocation2 + $0x88] sm:$0xff]
        %v426 = vld [vmem:[#allocation2 + $0x90] sm:$0xff]
        %v427 = vld [vmem:[#allocation2 + $0x98] sm:$0xff]
        %v428 = vld [vmem:[#allocation2 + $0xa0] sm:$0xff]
        %v429 = vld [vmem:[#allocation2 + $0xa8] sm:$0xff]
        %v430 = vld [vmem:[#allocation2 + $0xb0] sm:$0xff]
        %v431 = vld [vmem:[#allocation2 + $0xb8] sm:$0xff]
        %v432 = vld [vmem:[#allocation2 + $0xc0] sm:$0xff]
        %v433 = vld [vmem:[#allocation2 + $0xc8] sm:$0xff]
        %v434 = vld [vmem:[#allocation2 + $0xd0] sm:$0xff]
        %v435 = vld [vmem:[#allocation2 + $0xd8] sm:$0xff]
        %v436 = vld [vmem:[#allocation2 + $0xe0] sm:$0xff]
        %v437 = vld [vmem:[#allocation2 + $0xe8] sm:$0xff]
        %v438 = vld [vmem:[#allocation2 + $0xf0] sm:$0xff]
        %v439 = vld [vmem:[#allocation2 + $0xf8] sm:$0xff]
        %v440 = vld [vmem:[%s304] sm:$0xff]
        %v441 = vld [vmem:[%s304 + $0x8] sm:$0xff]
        %v442 = vld [vmem:[%s304 + $0x10] sm:$0xff]
        %v443 = vld [vmem:[%s304 + $0x18] sm:$0xff]
        %v444 = vld [vmem:[%s304 + $0x20] sm:$0xff]
        %v445 = vld [vmem:[%s304 + $0x28] sm:$0xff]
        %v446 = vld [vmem:[%s304 + $0x30] sm:$0xff]
        %v447 = vld [vmem:[%s304 + $0x38] sm:$0xff]
        %v448 = vld [vmem:[%s304 + $0x40] sm:$0xff]
        %v449 = vld [vmem:[%s304 + $0x48] sm:$0xff]
        %v450 = vld [vmem:[%s304 + $0x50] sm:$0xff]
        %v451 = vld [vmem:[%s304 + $0x58] sm:$0xff]
        %v452 = vld [vmem:[%s304 + $0x60] sm:$0xff]
        %v453 = vld [vmem:[%s304 + $0x68] sm:$0xff]
        %v454 = vld [vmem:[%s304 + $0x70] sm:$0xff]
        %v455 = vld [vmem:[%s304 + $0x78] sm:$0xff]
        %v456 = vld [vmem:[#allocation6] sm:$0xff]
        %v457 = vld [vmem:[#allocation6 + $0x8] sm:$0xff]
        %v458 = vld [vmem:[#allocation6 + $0x10] sm:$0xff]
        %v459 = vld [vmem:[#allocation6 + $0x18] sm:$0xff]
        %v460 = vld [vmem:[#allocation6 + $0x20] sm:$0xff]
        %v461 = vld [vmem:[#allocation6 + $0x28] sm:$0xff]
        %v462 = vld [vmem:[#allocation6 + $0x30] sm:$0xff]
        %v463 = vld [vmem:[#allocation6 + $0x38] sm:$0xff]
        %v464 = vld [vmem:[#allocation6 + $0x40] sm:$0xff]
        %v465 = vld [vmem:[#allocation6 + $0x48] sm:$0xff]
        %v466 = vld [vmem:[#allocation6 + $0x50] sm:$0xff]
        %v467 = vld [vmem:[#allocation6 + $0x58] sm:$0xff]
        %v468 = vld [vmem:[#allocation6 + $0x60] sm:$0xff]
        %v469 = vld [vmem:[#allocation6 + $0x68] sm:$0xff]
        %v470 = vld [vmem:[#allocation6 + $0x70] sm:$0xff]
        %v471 = vld [vmem:[#allocation6 + $0x78] sm:$0xff]
        %v472 = vld [vmem:[#allocation6 + $0x80] sm:$0xff]
        %v473 = vld [vmem:[#allocation6 + $0x88] sm:$0xff]
        %v474 = vld [vmem:[#allocation6 + $0x90] sm:$0xff]
        %v475 = vld [vmem:[#allocation6 + $0x98] sm:$0xff]
        %v476 = vld [vmem:[#allocation6 + $0xa0] sm:$0xff]
        %v477 = vld [vmem:[#allocation6 + $0xa8] sm:$0xff]
        %v478 = vld [vmem:[#allocation6 + $0xb0] sm:$0xff]
        %v479 = vld [vmem:[#allocation6 + $0xb8] sm:$0xff]
        %v480 = vld [vmem:[#allocation6 + $0xc0] sm:$0xff]
        %v481 = vld [vmem:[#allocation6 + $0xc8] sm:$0xff]
        %v482 = vld [vmem:[#allocation6 + $0xd0] sm:$0xff]
        %v483 = vld [vmem:[#allocation6 + $0xd8] sm:$0xff]
        %v484 = vld [vmem:[#allocation6 + $0xe0] sm:$0xff]
        %v485 = vld [vmem:[#allocation6 + $0xe8] sm:$0xff]
        %v486 = vld [vmem:[#allocation6 + $0xf0] sm:$0xff]
        %v487 = vld [vmem:[#allocation6 + $0xf8] sm:$0xff]
        %488 = vmatpush.msra.mxu0 %v486
        %489 = vmatpush.msra.mxu0 %v484
        %490 = vmatpush.msra.mxu0 %v482
        %491 = vmatpush.msra.mxu0 %v480
        %492 = vmatpush.msra.mxu0 %v478
        %493 = vmatpush.msra.mxu0 %v476
        %494 = vmatpush.msra.mxu0 %v474
        %495 = vmatpush.msra.mxu0 %v472
        %496 = vmatpush.msra.mxu0 %v470
        %497 = vmatpush.msra.mxu0 %v468
        %498 = vmatpush.msra.mxu0 %v466
        %499 = vmatpush.msra.mxu0 %v464
        %500 = vmatpush.msra.mxu0 %v462
        %501 = vmatpush.msra.mxu0 %v460
        %502 = vmatpush.msra.mxu0 %v458
        %503 = vmatpush.msra.mxu0 %v456
        %504 = vmatmul.f32.gmra.mxu0 %v440
        %v505 = vpop.f32.mrf.mxu0
        %v506 = vadd.f32 0.0, %v505
        %507 = vmatmul.f32.gmra.mxu0 %v441
        %v508 = vpop.f32.mrf.mxu0
        %v509 = vadd.f32 0.0, %v508
        %510 = vmatmul.f32.gmra.mxu0 %v442
        %v511 = vpop.f32.mrf.mxu0
        %v512 = vadd.f32 0.0, %v511
        %513 = vmatmul.f32.gmra.mxu0 %v443
        %v514 = vpop.f32.mrf.mxu0
        %v515 = vadd.f32 0.0, %v514
        %516 = vmatmul.f32.gmra.mxu0 %v444
        %v517 = vpop.f32.mrf.mxu0
        %v518 = vadd.f32 0.0, %v517
        %519 = vmatmul.f32.gmra.mxu0 %v445
        %v520 = vpop.f32.mrf.mxu0
        %v521 = vadd.f32 0.0, %v520
        %522 = vmatmul.f32.gmra.mxu0 %v446
        %v523 = vpop.f32.mrf.mxu0
        %v524 = vadd.f32 0.0, %v523
        %525 = vmatmul.f32.gmra.mxu0 %v447
        %v526 = vpop.f32.mrf.mxu0
        %v527 = vadd.f32 0.0, %v526
        %528 = vmatmul.f32.gmra.mxu0 %v448
        %v529 = vpop.f32.mrf.mxu0
        %v530 = vadd.f32 0.0, %v529
        %531 = vmatmul.f32.gmra.mxu0 %v449
        %v532 = vpop.f32.mrf.mxu0
        %v533 = vadd.f32 0.0, %v532
        %534 = vmatmul.f32.gmra.mxu0 %v450
        %v535 = vpop.f32.mrf.mxu0
        %v536 = vadd.f32 0.0, %v535
        %537 = vmatmul.f32.gmra.mxu0 %v451
        %v538 = vpop.f32.mrf.mxu0
        %v539 = vadd.f32 0.0, %v538
        %540 = vmatmul.f32.gmra.mxu0 %v452
        %v541 = vpop.f32.mrf.mxu0
        %v542 = vadd.f32 0.0, %v541
        %543 = vmatmul.f32.gmra.mxu0 %v453
        %v544 = vpop.f32.mrf.mxu0
        %v545 = vadd.f32 0.0, %v544
        %546 = vmatmul.f32.gmra.mxu0 %v454
        %v547 = vpop.f32.mrf.mxu0
        %v548 = vadd.f32 0.0, %v547
        %549 = vmatmul.f32.gmra.mxu0 %v455
        %v550 = vpop.f32.mrf.mxu0
        %v551 = vadd.f32 0.0, %v550
        %552 = vdwg.mxu0
        %553 = vmatpush.msra.mxu0 %v487
        %554 = vmatpush.msra.mxu0 %v485
        %555 = vmatpush.msra.mxu0 %v483
        %556 = vmatpush.msra.mxu0 %v481
        %557 = vmatpush.msra.mxu0 %v479
        %558 = vmatpush.msra.mxu0 %v477
        %559 = vmatpush.msra.mxu0 %v475
        %560 = vmatpush.msra.mxu0 %v473
        %561 = vmatpush.msra.mxu0 %v471
        %562 = vmatpush.msra.mxu0 %v469
        %563 = vmatpush.msra.mxu0 %v467
        %564 = vmatpush.msra.mxu0 %v465
        %565 = vmatpush.msra.mxu0 %v463
        %566 = vmatpush.msra.mxu0 %v461
        %567 = vmatpush.msra.mxu0 %v459
        %568 = vmatpush.msra.mxu0 %v457
        %569 = vmatmul.f32.gmra.mxu0 %v440
        %v570 = vpop.f32.mrf.mxu0
        %v571 = vadd.f32 0.0, %v570
        %572 = vmatmul.f32.gmra.mxu0 %v441
        %v573 = vpop.f32.mrf.mxu0
        %v574 = vadd.f32 0.0, %v573
        %575 = vmatmul.f32.gmra.mxu0 %v442
        %v576 = vpop.f32.mrf.mxu0
        %v577 = vadd.f32 0.0, %v576
        %578 = vmatmul.f32.gmra.mxu0 %v443
        %v579 = vpop.f32.mrf.mxu0
        %v580 = vadd.f32 0.0, %v579
        %581 = vmatmul.f32.gmra.mxu0 %v444
        %v582 = vpop.f32.mrf.mxu0
        %v583 = vadd.f32 0.0, %v582
        %584 = vmatmul.f32.gmra.mxu0 %v445
        %v585 = vpop.f32.mrf.mxu0
        %v586 = vadd.f32 0.0, %v585
        %587 = vmatmul.f32.gmra.mxu0 %v446
        %v588 = vpop.f32.mrf.mxu0
        %v589 = vadd.f32 0.0, %v588
        %590 = vmatmul.f32.gmra.mxu0 %v447
        %v591 = vpop.f32.mrf.mxu0
        %v592 = vadd.f32 0.0, %v591
        %593 = vmatmul.f32.gmra.mxu0 %v448
        %v594 = vpop.f32.mrf.mxu0
        %v595 = vadd.f32 0.0, %v594
        %596 = vmatmul.f32.gmra.mxu0 %v449
        %v597 = vpop.f32.mrf.mxu0
        %v598 = vadd.f32 0.0, %v597
        %599 = vmatmul.f32.gmra.mxu0 %v450
        %v600 = vpop.f32.mrf.mxu0
        %v601 = vadd.f32 0.0, %v600
        %602 = vmatmul.f32.gmra.mxu0 %v451
        %v603 = vpop.f32.mrf.mxu0
        %v604 = vadd.f32 0.0, %v603
        %605 = vmatmul.f32.gmra.mxu0 %v452
        %v606 = vpop.f32.mrf.mxu0
        %v607 = vadd.f32 0.0, %v606
        %608 = vmatmul.f32.gmra.mxu0 %v453
        %v609 = vpop.f32.mrf.mxu0
        %v610 = vadd.f32 0.0, %v609
        %611 = vmatmul.f32.gmra.mxu0 %v454
        %v612 = vpop.f32.mrf.mxu0
        %v613 = vadd.f32 0.0, %v612
        %614 = vmatmul.f32.gmra.mxu0 %v455
        %v615 = vpop.f32.mrf.mxu0
        %v616 = vadd.f32 0.0, %v615
        %617 = vdwg.mxu0
        %v618 = vadd.f32 %v408, %v506
        %v619 = vadd.f32 %v409, %v571
        %v620 = vadd.f32 %v410, %v509
        %v621 = vadd.f32 %v411, %v574
        %v622 = vadd.f32 %v412, %v512
        %v623 = vadd.f32 %v413, %v577
        %v624 = vadd.f32 %v414, %v515
        %v625 = vadd.f32 %v415, %v580
        %v626 = vadd.f32 %v416, %v518
        %v627 = vadd.f32 %v417, %v583
        %v628 = vadd.f32 %v418, %v521
        %v629 = vadd.f32 %v419, %v586
        %v630 = vadd.f32 %v420, %v524
        %v631 = vadd.f32 %v421, %v589
        %v632 = vadd.f32 %v422, %v527
        %v633 = vadd.f32 %v423, %v592
        %v634 = vadd.f32 %v424, %v530
        %v635 = vadd.f32 %v425, %v595
        %v636 = vadd.f32 %v426, %v533
        %v637 = vadd.f32 %v427, %v598
        %v638 = vadd.f32 %v428, %v536
        %v639 = vadd.f32 %v429, %v601
        %v640 = vadd.f32 %v430, %v539
        %v641 = vadd.f32 %v431, %v604
        %v642 = vadd.f32 %v432, %v542
        %v643 = vadd.f32 %v433, %v607
        %v644 = vadd.f32 %v434, %v545
        %v645 = vadd.f32 %v435, %v610
        %v646 = vadd.f32 %v436, %v548
        %v647 = vadd.f32 %v437, %v613
        %v648 = vadd.f32 %v438, %v551
        %v649 = vadd.f32 %v439, %v616
        %650 = vst [vmem:[#allocation2] sm:$0xff] %v618
        %651 = vst [vmem:[#allocation2 + $0x8] sm:$0xff] %v619
        %652 = vst [vmem:[#allocation2 + $0x10] sm:$0xff] %v620
        %653 = vst [vmem:[#allocation2 + $0x18] sm:$0xff] %v621
        %654 = vst [vmem:[#allocation2 + $0x20] sm:$0xff] %v622
        %655 = vst [vmem:[#allocation2 + $0x28] sm:$0xff] %v623
        %656 = vst [vmem:[#allocation2 + $0x30] sm:$0xff] %v624
        %657 = vst [vmem:[#allocation2 + $0x38] sm:$0xff] %v625
        %658 = vst [vmem:[#allocation2 + $0x40] sm:$0xff] %v626
        %659 = vst [vmem:[#allocation2 + $0x48] sm:$0xff] %v627
        %660 = vst [vmem:[#allocation2 + $0x50] sm:$0xff] %v628
        %661 = vst [vmem:[#allocation2 + $0x58] sm:$0xff] %v629
        %662 = vst [vmem:[#allocation2 + $0x60] sm:$0xff] %v630
        %663 = vst [vmem:[#allocation2 + $0x68] sm:$0xff] %v631
        %664 = vst [vmem:[#allocation2 + $0x70] sm:$0xff] %v632
        %665 = vst [vmem:[#allocation2 + $0x78] sm:$0xff] %v633
        %666 = vst [vmem:[#allocation2 + $0x80] sm:$0xff] %v634
        %667 = vst [vmem:[#allocation2 + $0x88] sm:$0xff] %v635
        %668 = vst [vmem:[#allocation2 + $0x90] sm:$0xff] %v636
        %669 = vst [vmem:[#allocation2 + $0x98] sm:$0xff] %v637
        %670 = vst [vmem:[#allocation2 + $0xa0] sm:$0xff] %v638
        %671 = vst [vmem:[#allocation2 + $0xa8] sm:$0xff] %v639
        %672 = vst [vmem:[#allocation2 + $0xb0] sm:$0xff] %v640
        %673 = vst [vmem:[#allocation2 + $0xb8] sm:$0xff] %v641
        %674 = vst [vmem:[#allocation2 + $0xc0] sm:$0xff] %v642
        %675 = vst [vmem:[#allocation2 + $0xc8] sm:$0xff] %v643
        %676 = vst [vmem:[#allocation2 + $0xd0] sm:$0xff] %v644
        %677 = vst [vmem:[#allocation2 + $0xd8] sm:$0xff] %v645
        %678 = vst [vmem:[#allocation2 + $0xe0] sm:$0xff] %v646
        %679 = vst [vmem:[#allocation2 + $0xe8] sm:$0xff] %v647
        %680 = vst [vmem:[#allocation2 + $0xf0] sm:$0xff] %v648
        %681 = vst [vmem:[#allocation2 + $0xf8] sm:$0xff] %v649
        // Predicated region
        $region57: #{tpu_custom_call.1} parent=35 // pred_check
          %p682 = pneg %p372
        $region58: #{tpu_custom_call.1} parent=35 // pred_check_branch
          %684 = sbr.rel (%p682) target = $region60
        $region59: #{tpu_custom_call.1} parent=35 // pred_region
          %v685 = vld [vmem:[#allocation2] sm:$0xff]
          %v686 = vld [vmem:[#allocation2 + $0x8] sm:$0xff]
          %v687 = vld [vmem:[#allocation2 + $0x10] sm:$0xff]
          %v688 = vld [vmem:[#allocation2 + $0x18] sm:$0xff]
          %v689 = vld [vmem:[#allocation2 + $0x20] sm:$0xff]
          %v690 = vld [vmem:[#allocation2 + $0x28] sm:$0xff]
          %v691 = vld [vmem:[#allocation2 + $0x30] sm:$0xff]
          %v692 = vld [vmem:[#allocation2 + $0x38] sm:$0xff]
          %v693 = vld [vmem:[#allocation2 + $0x40] sm:$0xff]
          %v694 = vld [vmem:[#allocation2 + $0x48] sm:$0xff]
          %v695 = vld [vmem:[#allocation2 + $0x50] sm:$0xff]
          %v696 = vld [vmem:[#allocation2 + $0x58] sm:$0xff]
          %v697 = vld [vmem:[#allocation2 + $0x60] sm:$0xff]
          %v698 = vld [vmem:[#allocation2 + $0x68] sm:$0xff]
          %v699 = vld [vmem:[#allocation2 + $0x70] sm:$0xff]
          %v700 = vld [vmem:[#allocation2 + $0x78] sm:$0xff]
          %v701 = vld [vmem:[#allocation2 + $0x80] sm:$0xff]
          %v702 = vld [vmem:[#allocation2 + $0x88] sm:$0xff]
          %v703 = vld [vmem:[#allocation2 + $0x90] sm:$0xff]
          %v704 = vld [vmem:[#allocation2 + $0x98] sm:$0xff]
          %v705 = vld [vmem:[#allocation2 + $0xa0] sm:$0xff]
          %v706 = vld [vmem:[#allocation2 + $0xa8] sm:$0xff]
          %v707 = vld [vmem:[#allocation2 + $0xb0] sm:$0xff]
          %v708 = vld [vmem:[#allocation2 + $0xb8] sm:$0xff]
          %v709 = vld [vmem:[#allocation2 + $0xc0] sm:$0xff]
          %v710 = vld [vmem:[#allocation2 + $0xc8] sm:$0xff]
          %v711 = vld [vmem:[#allocation2 + $0xd0] sm:$0xff]
          %v712 = vld [vmem:[#allocation2 + $0xd8] sm:$0xff]
          %v713 = vld [vmem:[#allocation2 + $0xe0] sm:$0xff]
          %v714 = vld [vmem:[#allocation2 + $0xe8] sm:$0xff]
          %v715 = vld [vmem:[#allocation2 + $0xf0] sm:$0xff]
          %v716 = vld [vmem:[#allocation2 + $0xf8] sm:$0xff]
          %v717 = vld [vmem:[%s319] sm:$0x3]
          %v719 = vperm.slane %v717, 0
          %v720 = vperm.slane %v717, 1
          %v723 = vmul.f32 %v685, %v719
          %v724 = vmul.f32 %v686, %v720
          %v725 = vmul.f32 %v687, %v719
          %v726 = vmul.f32 %v688, %v720
          %v727 = vmul.f32 %v689, %v719
          %v728 = vmul.f32 %v690, %v720
          %v729 = vmul.f32 %v691, %v719
          %v730 = vmul.f32 %v692, %v720
          %v731 = vmul.f32 %v693, %v719
          %v732 = vmul.f32 %v694, %v720
          %v733 = vmul.f32 %v695, %v719
          %v734 = vmul.f32 %v696, %v720
          %v735 = vmul.f32 %v697, %v719
          %v736 = vmul.f32 %v698, %v720
          %v737 = vmul.f32 %v699, %v719
          %v738 = vmul.f32 %v700, %v720
          %v739 = vmul.f32 %v701, %v719
          %v740 = vmul.f32 %v702, %v720
          %v741 = vmul.f32 %v703, %v719
          %v742 = vmul.f32 %v704, %v720
          %v743 = vmul.f32 %v705, %v719
          %v744 = vmul.f32 %v706, %v720
          %v745 = vmul.f32 %v707, %v719
          %v746 = vmul.f32 %v708, %v720
          %v747 = vmul.f32 %v709, %v719
          %v748 = vmul.f32 %v710, %v720
          %v749 = vmul.f32 %v711, %v719
          %v750 = vmul.f32 %v712, %v720
          %v751 = vmul.f32 %v713, %v719
          %v752 = vmul.f32 %v714, %v720
          %v753 = vmul.f32 %v715, %v719
          %v754 = vmul.f32 %v716, %v720
          %v755 = vld [vmem:[%s329] sm:$0x3]
          %v757 = vperm.slane %v755, 0
          %v758 = vperm.slane %v755, 1
          %v761 = vadd.f32 %v723, %v757
          %v762 = vadd.f32 %v724, %v758
          %v763 = vadd.f32 %v725, %v757
          %v764 = vadd.f32 %v726, %v758
          %v765 = vadd.f32 %v727, %v757
          %v766 = vadd.f32 %v728, %v758
          %v767 = vadd.f32 %v729, %v757
          %v768 = vadd.f32 %v730, %v758
          %v769 = vadd.f32 %v731, %v757
          %v770 = vadd.f32 %v732, %v758
          %v771 = vadd.f32 %v733, %v757
          %v772 = vadd.f32 %v734, %v758
          %v773 = vadd.f32 %v735, %v757
          %v774 = vadd.f32 %v736, %v758
          %v775 = vadd.f32 %v737, %v757
          %v776 = vadd.f32 %v738, %v758
          %v777 = vadd.f32 %v739, %v757
          %v778 = vadd.f32 %v740, %v758
          %v779 = vadd.f32 %v741, %v757
          %v780 = vadd.f32 %v742, %v758
          %v781 = vadd.f32 %v743, %v757
          %v782 = vadd.f32 %v744, %v758
          %v783 = vadd.f32 %v745, %v757
          %v784 = vadd.f32 %v746, %v758
          %v785 = vadd.f32 %v747, %v757
          %v786 = vadd.f32 %v748, %v758
          %v787 = vadd.f32 %v749, %v757
          %v788 = vadd.f32 %v750, %v758
          %v789 = vadd.f32 %v751, %v757
          %v790 = vadd.f32 %v752, %v758
          %v791 = vadd.f32 %v753, %v757
          %v792 = vadd.f32 %v754, %v758
          %793 = vst [vmem:[%s364] sm:$0xff] %v761
          %794 = vst [vmem:[%s364 + $0x8] sm:$0xff] %v762
          %795 = vst [vmem:[%s364 + $0x10] sm:$0xff] %v763
          %796 = vst [vmem:[%s364 + $0x18] sm:$0xff] %v764
          %797 = vst [vmem:[%s364 + $0x20] sm:$0xff] %v765
          %798 = vst [vmem:[%s364 + $0x28] sm:$0xff] %v766
          %799 = vst [vmem:[%s364 + $0x30] sm:$0xff] %v767
          %800 = vst [vmem:[%s364 + $0x38] sm:$0xff] %v768
          %801 = vst [vmem:[%s364 + $0x40] sm:$0xff] %v769
          %802 = vst [vmem:[%s364 + $0x48] sm:$0xff] %v770
          %803 = vst [vmem:[%s364 + $0x50] sm:$0xff] %v771
          %804 = vst [vmem:[%s364 + $0x58] sm:$0xff] %v772
          %805 = vst [vmem:[%s364 + $0x60] sm:$0xff] %v773
          %806 = vst [vmem:[%s364 + $0x68] sm:$0xff] %v774
          %807 = vst [vmem:[%s364 + $0x70] sm:$0xff] %v775
          %808 = vst [vmem:[%s364 + $0x78] sm:$0xff] %v776
          %809 = vst [vmem:[%s364 + $0x80] sm:$0xff] %v777
          %810 = vst [vmem:[%s364 + $0x88] sm:$0xff] %v778
          %811 = vst [vmem:[%s364 + $0x90] sm:$0xff] %v779
          %812 = vst [vmem:[%s364 + $0x98] sm:$0xff] %v780
          %813 = vst [vmem:[%s364 + $0xa0] sm:$0xff] %v781
          %814 = vst [vmem:[%s364 + $0xa8] sm:$0xff] %v782
          %815 = vst [vmem:[%s364 + $0xb0] sm:$0xff] %v783
          %816 = vst [vmem:[%s364 + $0xb8] sm:$0xff] %v784
          %817 = vst [vmem:[%s364 + $0xc0] sm:$0xff] %v785
          %818 = vst [vmem:[%s364 + $0xc8] sm:$0xff] %v786
          %819 = vst [vmem:[%s364 + $0xd0] sm:$0xff] %v787
          %820 = vst [vmem:[%s364 + $0xd8] sm:$0xff] %v788
          %821 = vst [vmem:[%s364 + $0xe0] sm:$0xff] %v789
          %822 = vst [vmem:[%s364 + $0xe8] sm:$0xff] %v790
          %823 = vst [vmem:[%s364 + $0xf0] sm:$0xff] %v791
          %824 = vst [vmem:[%s364 + $0xf8] sm:$0xff] %v792
        $region60: #{tpu_custom_call.1} parent=35 // pred_fallthru
          _
        %s825 = sand.u32 %s174, 1
        %s826 = scalar_lea.sflag [#allocation5], %s825
        %s827 = sand.u32 %s174, 1
        %s828 = smul.addr %s827, 256
        %s829 = scalar_lea.vmem [#allocation10], %s828
        // Predicated region
        $region61: #{tpu_custom_call.1} parent=35 // pred_check
          %p830 = pneg %p184
        $region62: #{tpu_custom_call.1} parent=35 // pred_check_branch
          %832 = sbr.rel (%p830) target = $region64
        $region63: #{tpu_custom_call.1} parent=35 // pred_region
          %s833 = smul.u32 16, %s29
          %s834 = smul.u32 2, %s30
          %836 = vsyncadd %s826, 0
          %s837 = smul.addr %s833, 2
          %s838 = sadd.s32 %s834, %s837
          %s839 = smul.addr %s28, 32
          %s840 = sadd.s32 %s838, %s839
          %s841 = smul.addr %s840, 8
          %s842 = scalar_lea.hbm %s4, %s841
          %s843 = sshll.u32 %s829, 4
          %s844 = int_to_ptr.vmem [resolvable:$true] %s843
          %s845 = sshll.u32 %s842, 4
          %s846 = int_to_ptr.hbm [resolvable:$true] %s845
          %851 = dma.vmem_to_hbm [thread:$0]  %s844, 4096, %s846, %s826, 256, 256, 16
        $region64: #{tpu_custom_call.1} parent=35 // pred_fallthru
          _
      $region36: #{tpu_custom_call.1} parent=5 // pred_fallthru
        _
      %p852 = scmp.le.s32.totalorder 2, %s17
      // Predicated region
      $region65: #{tpu_custom_call.1} parent=5 // pred_check
        %p853 = pneg %p852
      $region66: #{tpu_custom_call.1} parent=5 // pred_check_branch
        %855 = sbr.rel (%p853) target = $region68
      $region67: #{tpu_custom_call.1} parent=5 // pred_region
        %s856 = ssub.s32 %s17, 2
        // Predicated region
        $region69: #{tpu_custom_call.1} parent=67 // pred_check
          %p857 = pneg %p190
        $region70: #{tpu_custom_call.1} parent=67 // pred_check_branch
          %859 = sbr.rel (%p857) target = $region72
        $region71: #{tpu_custom_call.1} parent=67 // pred_region
          %s860 = sand.u32 %s175, 1
          %s861 = scalar_lea.sflag [#allocation5], %s860
          %s862 = sand.u32 %s175, 1
          %s863 = smul.addr %s862, 256
          %s864 = scalar_lea.vmem [#allocation10], %s863
          %866 = dma.done %s861, 4096
        $region72: #{tpu_custom_call.1} parent=67 // pred_fallthru
          _
      $region68: #{tpu_custom_call.1} parent=5 // pred_fallthru
        _
    $region6: #{tpu_custom_call.1} parent=1 // loop_footer
      %s21 = sadd.s32 1, %s17
    $region7: #{tpu_custom_call.1} parent=1 // loop_footer_branch
      %16 = sbr.rel target = $region3
    $region8: #{tpu_custom_call.1} parent=1 // loop_exit
      _
    %867 = vsyncpa [#allocation4], 1
    %s868 = scalar_lea.sflag [#allocation4], 1
    %869 = vsyncpa %s868, 1
    %870 = vsyncpa [#allocation7], 1
    %871 = vsyncpa [#allocation5], 1
    %s872 = scalar_lea.sflag [#allocation5], 1
    %873 = vsyncpa %s872, 1

</llo_original>
